<compile_context>
chip_gen: v7x
topology: tpu7x:2x2x1
jax: 0.10.0
libtpu: 0.0.40
codegen_flags: <defaults>
</compile_context>

<pallas_src>
import functools

import jax
import jax.numpy as jnp
from jax.experimental import pallas as pl
from jax.experimental.pallas import tpu as pltpu


def se_kernel(x_ref, w1_ref, w2_ref, o_ref, *, inv_hw):
    """Squeeze-excite: pool -> fc1 -> relu -> fc2 -> sigmoid -> scale.

    x_ref  : (b_tile, C, HW)   streamed input tile
    w1_ref : (C, Cr)           fc1.weight.T (VMEM-resident)
    w2_ref : (Cr, C)           fc2.weight.T (VMEM-resident)
    o_ref  : (b_tile, C, HW)   streamed output tile
    """
    # Global average pool.  Fold f32 accumulation into the reduce so no
    # full-tile f32 temp is materialized for sub-f32 input dtypes.
    y = jnp.sum(x_ref[...], axis=-1, dtype=jnp.float32) * inv_hw       # (bt, C)
    # Tiny MLP: stays in vregs / MXU, hidden under the streaming DMA.
    h = jnp.maximum(
        jnp.dot(y, w1_ref[...], preferred_element_type=jnp.float32), 0.0)
    s = jax.nn.sigmoid(
        jnp.dot(h, w2_ref[...], preferred_element_type=jnp.float32))   # (bt, C)
    # Channel-wise rescale (broadcast over the HW lane axis).  Re-index x_ref
    # instead of keeping a full-tile value live across the MLP.
    o_ref[...] = x_ref[...] * s[:, :, None].astype(o_ref.dtype)


def _vmem_capacity_bytes() -> int:
    """Physical per-core VMEM; conservative fallback if the query is unavailable."""
    try:
        return int(pltpu.get_tpu_info().vmem_capacity_bytes)
    except Exception:
        return 64 * 1024 * 1024          # v7x per-TensorCore size (smallest gen)


def se_layer_pallas(x_nchw, w1_t, w2_t):
    """x_nchw: (B, C, H, W); w1_t: (C, Cr); w2_t: (Cr, C). Returns (B, C, H, W)."""
    b, c, h, w = x_nchw.shape
    hw = h * w
    cr = w1_t.shape[1]
    x3 = x_nchw.reshape(b, c, hw)        # free: row-major merge of trailing dims
    itemsize = jnp.dtype(x_nchw.dtype).itemsize

    # --- Generation-aware VMEM budget -------------------------------------
    # Pipeline footprint ~= 2 double-buffered input slabs + 2 output slabs +
    # resident weights + margin.  Target ~70% of physical VMEM and pass a
    # matching vmem_limit_bytes (v5e scoped default is only 16 MiB otherwise).
    vmem_cap = _vmem_capacity_bytes()
    weight_bytes = (w1_t.size * jnp.dtype(w1_t.dtype).itemsize
                    + w2_t.size * jnp.dtype(w2_t.dtype).itemsize)
    margin = 4 * 1024 * 1024
    vmem_target = int(vmem_cap * 0.70)
    slab_budget = max(
        1, min((vmem_target - weight_bytes - margin) // 4, 16 * 1024 * 1024))

    # Bytes one batch element occupies in the streamed VMEM slab, including
    # sublane padding of the (C, HW) minor dims (C < 8/16/32 rounds up).
    sublane_pack = 8 * max(1, 4 // itemsize)
    c_padded = ((c + sublane_pack - 1) // sublane_pack) * sublane_pack
    per_b_bytes = c_padded * hw * itemsize

    # Largest batch tile inside the budget.  No divisibility search: the grid
    # uses cdiv; rows are independent, so the partial tail block is harmless
    # (its out-of-bounds output rows are dropped).
    b_tile = max(1, min(b, slab_budget // max(per_b_bytes, 1)))
    # Keep >= 2 (ideally >= 4) grid steps so the batch axis can be split across
    # v7x's two TensorCores and the DMA pipeline has iterations to overlap.
    if b >= 4:
        b_tile = min(b_tile, pl.cdiv(b, 4))
    elif b >= 2:
        b_tile = min(b_tile, pl.cdiv(b, 2))
    grid = (pl.cdiv(b, b_tile),)

    slab_bytes = b_tile * per_b_bytes
    vmem_limit = int(min(max(4 * slab_bytes + weight_bytes + margin,
                             32 * 1024 * 1024),
                         vmem_cap * 0.85))

    cost = pl.CostEstimate(
        flops=2 * b * c * hw + 2 * b * (c * cr + cr * c),   # pool+scale, 2 matmuls
        transcendentals=b * c,                              # sigmoid
        bytes_accessed=2 * b * c * hw * itemsize + weight_bytes,
    )

    kernel = functools.partial(se_kernel, inv_hw=1.0 / hw)

    # Layout: (B, C, HW) puts HW on the lane axis; for SE spatial sizes that
    # are multiples of 128 (e.g. 16x16=256) stores are lane-dense unmasked vst.
    # For 7x7 / 14x14-style HW an un-fused pad+slice in the wrapper would cost
    # a full extra pass over x, which is worse than masked tail stores, so we
    # keep full-extent HW blocks (see layout TODO at top of file).
    out3 = pl.pallas_call(
        kernel,
        out_shape=jax.ShapeDtypeStruct((b, c, hw), x_nchw.dtype),
        grid=grid,
        in_specs=[
            pl.BlockSpec((b_tile, c, hw), lambda i: (i, 0, 0)),
            pl.BlockSpec(w1_t.shape, lambda i: (0, 0)),     # VMEM-resident
            pl.BlockSpec(w2_t.shape, lambda i: (0, 0)),     # VMEM-resident
        ],
        out_specs=pl.BlockSpec((b_tile, c, hw), lambda i: (i, 0, 0)),
        compiler_params=pltpu.CompilerParams(
            dimension_semantics=("parallel",),              # megacore-shardable
            vmem_limit_bytes=vmem_limit,
        ),
        cost_estimate=cost,
    )(x3, w1_t, w2_t)

    return out3.reshape(b, c, h, w)


def se_layer_ref(x_nchw, w1_t, w2_t):
    """Pure-JAX reference mirroring the PyTorch module."""
    y = jnp.mean(x_nchw, axis=(2, 3))                       # (B, C)
    y = jnp.maximum(y @ w1_t, 0.0)                          # (B, Cr)
    y = jax.nn.sigmoid(y @ w2_t)                            # (B, C)
    return x_nchw * y[:, :, None, None]


if __name__ == "__main__":
    # SELayer(channel=4, reduction=1)  ->  Cr = channel // reduction = 4
    B, C, H, W = 2, 4, 16, 16
    reduction = 1
    Cr = C // reduction

    key = jax.random.PRNGKey(0)
    kx, k1, k2 = jax.random.split(key, 3)

    x = jax.random.normal(kx, (B, C, H, W), dtype=jnp.float32)

    # PyTorch nn.Linear weight is (out_features, in_features); pass transposes
    # so the kernel computes y @ W.T as plain matmuls.
    fc1_w = jax.random.normal(k1, (Cr, C), dtype=jnp.float32) * (1.0 / jnp.sqrt(C))
    fc2_w = jax.random.normal(k2, (C, Cr), dtype=jnp.float32) * (1.0 / jnp.sqrt(Cr))
    w1_t = fc1_w.T   # (C, Cr)
    w2_t = fc2_w.T   # (Cr, C)

    out = se_layer_pallas(x, w1_t, w2_t)
    out = jax.block_until_ready(out)

    ref = se_layer_ref(x, w1_t, w2_t)
    assert out.shape == (B, C, H, W)
    assert jnp.allclose(out, ref, atol=1e-5, rtol=1e-5), "mismatch vs reference"

    print("KERNEL_OK")
</pallas_src>

<mosaic_0001>
module attributes {stable_mosaic.version = 11 : i64} {
  func.func @se_kernel(%arg0: i32, %arg1: memref<1x4x256xf32, #tpu.memory_space<vmem>>, %arg2: memref<4x4xf32, #tpu.memory_space<vmem>>, %arg3: memref<4x4xf32, #tpu.memory_space<vmem>>, %arg4: memref<1x4x256xf32, #tpu.memory_space<vmem>>) attributes {dimension_semantics = [#tpu.dimension_semantics<parallel>], iteration_bounds = array<i64: 2>, scalar_prefetch = 0 : i64, scratch_operands = 0 : i64, tpu.core_type = #tpu.core_type<tc>, window_params = [{transform_indices = @transform_0, window_bounds = array<i64: 1, 4, 256>}, {pipeline_mode = #tpu.pipeline_mode<synchronous>, transform_indices = @transform_1, window_bounds = array<i64: 4, 4>}, {pipeline_mode = #tpu.pipeline_mode<synchronous>, transform_indices = @transform_2, window_bounds = array<i64: 4, 4>}, {transform_indices = @transform_3, window_bounds = array<i64: 1, 4, 256>}]} {
    %c0 = arith.constant 0 : index
    %c0_0 = arith.constant 0 : index
    %c0_1 = arith.constant 0 : index
    %0 = vector.load %arg1[%c0, %c0_0, %c0_1] : memref<1x4x256xf32, #tpu.memory_space<vmem>>, vector<1x4x256xf32>
    %cst = arith.constant dense<0.000000e+00> : vector<1x4xf32>
    %1 = vector.multi_reduction <add>, %0, %cst [2] : vector<1x4x256xf32> to vector<1x4xf32>
    %cst_2 = arith.constant 3.906250e-03 : f32
    %2 = vector.broadcast %cst_2 : f32 to vector<1x4xf32>
    %3 = arith.mulf %1, %2 : vector<1x4xf32>
    %c0_3 = arith.constant 0 : index
    %c0_4 = arith.constant 0 : index
    %4 = vector.load %arg2[%c0_3, %c0_4] : memref<4x4xf32, #tpu.memory_space<vmem>>, vector<4x4xf32>
    %cst_5 = arith.constant dense<0.000000e+00> : vector<1x4xf32>
    %5 = tpu.matmul %3, %4, %cst_5 {dimension_numbers = #tpu.dot_dimension_numbers<[1], [0], [0], [1], [0, 0, 1, 1], [], []>} : vector<1x4xf32>, vector<4x4xf32>, vector<1x4xf32> -> vector<1x4xf32>
    %cst_6 = arith.constant 0.000000e+00 : f32
    %6 = vector.broadcast %cst_6 : f32 to vector<1x4xf32>
    %7 = arith.maximumf %5, %6 : vector<1x4xf32>
    %c0_7 = arith.constant 0 : index
    %c0_8 = arith.constant 0 : index
    %8 = vector.load %arg3[%c0_7, %c0_8] : memref<4x4xf32, #tpu.memory_space<vmem>>, vector<4x4xf32>
    %cst_9 = arith.constant dense<0.000000e+00> : vector<1x4xf32>
    %9 = tpu.matmul %7, %8, %cst_9 {dimension_numbers = #tpu.dot_dimension_numbers<[1], [0], [0], [1], [0, 0, 1, 1], [], []>} : vector<1x4xf32>, vector<4x4xf32>, vector<1x4xf32> -> vector<1x4xf32>
    %10 = arith.negf %9 : vector<1x4xf32>
    %11 = math.exp %10 : vector<1x4xf32>
    %cst_10 = arith.constant 1.000000e+00 : f32
    %12 = vector.broadcast %cst_10 : f32 to vector<1x4xf32>
    %13 = arith.addf %12, %11 : vector<1x4xf32>
    %14 = arith.divf %12, %13 : vector<1x4xf32>
    %c0_11 = arith.constant 0 : index
    %c0_12 = arith.constant 0 : index
    %c0_13 = arith.constant 0 : index
    %15 = vector.load %arg1[%c0_11, %c0_12, %c0_13] : memref<1x4x256xf32, #tpu.memory_space<vmem>>, vector<1x4x256xf32>
    %16 = vector.shape_cast %14 : vector<1x4xf32> to vector<1x4x1xf32>
    %17 = vector.broadcast %16 : vector<1x4x1xf32> to vector<1x4x256xf32>
    %18 = arith.mulf %15, %17 : vector<1x4x256xf32>
    %c0_14 = arith.constant 0 : index
    %c0_15 = arith.constant 0 : index
    %c0_16 = arith.constant 0 : index
    %19 = vector.load %arg4[%c0_14, %c0_15, %c0_16] : memref<1x4x256xf32, #tpu.memory_space<vmem>>, vector<1x4x256xf32>
    tpu.vector_store %arg4[%c0_14, %c0_15, %c0_16], %18 {strides = array<i32>} : memref<1x4x256xf32, #tpu.memory_space<vmem>>, vector<1x4x256xf32>,
    return
  }
  func.func @transform_0(%arg0: i32) -> (i32, i32, i32) {
    %c0_i32 = arith.constant 0 : i32
    %c0_i32_0 = arith.constant 0 : i32
    %c0_i32_1 = arith.constant 0 : i32
    return %arg0, %c0_i32, %c0_i32_0 : i32, i32, i32
  }
  func.func @transform_1(%arg0: i32) -> (i32, i32) {
    %c0_i32 = arith.constant 0 : i32
    %c0_i32_0 = arith.constant 0 : i32
    %c0_i32_1 = arith.constant 0 : i32
    return %c0_i32, %c0_i32_0 : i32, i32
  }
  func.func @transform_2(%arg0: i32) -> (i32, i32) {
    %c0_i32 = arith.constant 0 : i32
    %c0_i32_0 = arith.constant 0 : i32
    %c0_i32_1 = arith.constant 0 : i32
    return %c0_i32, %c0_i32_0 : i32, i32
  }
  func.func @transform_3(%arg0: i32) -> (i32, i32, i32) {
    %c0_i32 = arith.constant 0 : i32
    %c0_i32_0 = arith.constant 0 : i32
    %c0_i32_1 = arith.constant 0 : i32
    return %arg0, %c0_i32, %c0_i32_0 : i32, i32, i32
  }
}

</mosaic_0001>

<llo_original>
// kernel: tpu_custom_call.1
$region0: #{tpu_custom_call.1}
  #allocation0 [shape = 'u32[]', space=smem, size = 0x4, offset = 0x4, fixed_abs, tag = 'smem constant byte address 0x4 - core index']
  #allocation1 [shape = 'u32[144,128]{1,0:T(1,128)}', space=vmem, size = 0x12000, scoped, tag = 'internal scratch']
  %s0 = inlined_call_operand.hbm [shape: f32[2,4,256], index: 0, kind: input, shape index: {}]
  %s1 = inlined_call_operand.hbm [shape: f32[4,4], index: 1, kind: input, shape index: {}]
  %s2 = inlined_call_operand.vmem [shape: f32[4,4], index: 2, kind: input, shape index: {}]
  %s3 = inlined_call_operand.hbm [shape: f32[2,4,256], index: 3, kind: output, shape index: {}]
  %s4 = sld [smem:[#allocation0]]
  $region53: #{tpu_custom_call.1} parent=0
    _
  %s6 = ssub.s32 1, %s4
  %s7 = scalar_select 0, %s6, %s4
  $region1: #{tpu_custom_call.1} parent=0
    #allocation2 [shape = 'u8[8192]{0}', space=vmem, size = 0x2000, scoped, tag = 'input window, operand 0']
    #allocation3 [shape = 's32[2]{0}', space=sflag, size = 0x8, scoped, tag = 'scoped memory for tpu_custom_call.1']
    #allocation4 [shape = 's32[2]{0}', space=sflag, size = 0x8, scoped, tag = 'scoped memory for tpu_custom_call.1']
    #allocation5 [shape = 'u8[2048]{0}', space=vmem, size = 0x800, scoped, tag = 'input window, operand 1, single buffered']
    #allocation6 [shape = 's32[1]{0}', space=sflag, size = 0x4, scoped, tag = 'scoped memory for tpu_custom_call.1']
    #allocation7 [shape = 'u8[8192]{0}', space=vmem, size = 0x2000, scoped, tag = 'output window, operand 0']
    %8 = vsyncpa [#allocation3], 0
    %s9 = scalar_lea.sflag [#allocation3], 1
    %10 = vsyncpa %s9, 0
    %11 = vsyncpa [#allocation6], 0
    %12 = vsyncpa [#allocation4], 0
    %s13 = scalar_lea.sflag [#allocation4], 1
    %14 = vsyncpa %s13, 0
    loop: start=0, step=1, limit=4
    $region2: #{tpu_custom_call.1} parent=1 // loop_pre_header
      _
    $region3: #{tpu_custom_call.1} parent=1 // loop_header
      %s16 = sphi 0, %s20
      %p17 = scmp.ge.s32.totalorder %s16, 4
      %s26 = sphi 0, %s28
      %s29 = sphi 0, %s26
      %s30 = sphi 0, %s29
      %s46 = sphi 0, %s30
      %s50 = sphi 0, %s50
      %s52 = sphi 0, %s50
      %s53 = sphi 0, %s52
      %s67 = sphi 0, %s53
      %s71 = sphi 0, %s71
      %s73 = sphi 0, %s71
      %s74 = sphi 0, %s73
      %s88 = sphi 0, %s74
      %s94 = sphi 0, %s96
      %s97 = sphi 0, %s94
      %s98 = sphi 0, %s97
      %s114 = sphi 0, %s98
    $region4: #{tpu_custom_call.1} parent=1 // loop_header_branch
      %19 = sbr.rel (%p17) target = $region8
    $region5: #{tpu_custom_call.1} parent=1 // loop_body
      %s21 = ssub.s32 %s16, 1
      %s22 = ssub.s32 %s16, 2
      %s23 = sadd.s32 %s16, 1
      %s24 = ssub.s32 %s16, %s23
      %p25 = scmp.eq.s32.totalorder %s24, 0
      %s27 = sadd.s32 %s26, 1
      %s28 = scalar_select %p25, %s26, %s27
      %p31 = pneg %p25
      %p32 = scmp.eq.s32.totalorder %s16, 1
      %p33 = por %p31, %p32
      %p34 = scmp.ne.s32.totalorder %s26, %s29
      %p35 = scmp.eq.s32.totalorder %s16, 0
      %p36 = por %p34, %p35
      %p37 = scmp.ne.s32.totalorder %s26, %s29
      %p38 = scmp.eq.s32.totalorder %s21, 1
      %p39 = por %p37, %p38
      %p40 = scmp.ne.s32.totalorder %s29, %s30
      %p41 = scmp.eq.s32.totalorder %s21, 0
      %p42 = por %p40, %p41
      %p43 = scmp.ne.s32.totalorder %s29, %s30
      %p44 = scmp.eq.s32.totalorder %s22, 1
      %p45 = por %p43, %p44
      %p47 = scmp.ne.s32.totalorder %s30, %s46
      %p48 = scmp.eq.s32.totalorder %s22, 0
      %p49 = por %p47, %p48
      %s51 = sadd.s32 %s50, 1
      %p54 = scmp.eq.s32.totalorder %s16, 1
      %p55 = scmp.ne.s32.totalorder %s50, %s52
      %p56 = scmp.eq.s32.totalorder %s16, 0
      %p57 = por %p55, %p56
      %p58 = scmp.ne.s32.totalorder %s50, %s52
      %p59 = scmp.eq.s32.totalorder %s21, 1
      %p60 = por %p58, %p59
      %p61 = scmp.ne.s32.totalorder %s52, %s53
      %p62 = scmp.eq.s32.totalorder %s21, 0
      %p63 = por %p61, %p62
      %p64 = scmp.ne.s32.totalorder %s52, %s53
      %p65 = scmp.eq.s32.totalorder %s22, 1
      %p66 = por %p64, %p65
      %p68 = scmp.ne.s32.totalorder %s53, %s67
      %p69 = scmp.eq.s32.totalorder %s22, 0
      %p70 = por %p68, %p69
      %s72 = sadd.s32 %s71, 1
      %p75 = scmp.eq.s32.totalorder %s16, 1
      %p76 = scmp.ne.s32.totalorder %s71, %s73
      %p77 = scmp.eq.s32.totalorder %s16, 0
      %p78 = por %p76, %p77
      %p79 = scmp.ne.s32.totalorder %s71, %s73
      %p80 = scmp.eq.s32.totalorder %s21, 1
      %p81 = por %p79, %p80
      %p82 = scmp.ne.s32.totalorder %s73, %s74
      %p83 = scmp.eq.s32.totalorder %s21, 0
      %p84 = por %p82, %p83
      %p85 = scmp.ne.s32.totalorder %s73, %s74
      %p86 = scmp.eq.s32.totalorder %s22, 1
      %p87 = por %p85, %p86
      %p89 = scmp.ne.s32.totalorder %s74, %s88
      %p90 = scmp.eq.s32.totalorder %s22, 0
      %p91 = por %p89, %p90
      %s92 = ssub.s32 %s16, %s23
      %p93 = scmp.eq.s32.totalorder %s92, 0
      %s95 = sadd.s32 %s94, 1
      %s96 = scalar_select %p93, %s94, %s95
      %p99 = pneg %p93
      %p100 = scmp.eq.s32.totalorder %s16, 1
      %p101 = por %p99, %p100
      %p102 = scmp.ne.s32.totalorder %s94, %s97
      %p103 = scmp.eq.s32.totalorder %s16, 0
      %p104 = por %p102, %p103
      %p105 = scmp.ne.s32.totalorder %s94, %s97
      %p106 = scmp.eq.s32.totalorder %s21, 1
      %p107 = por %p105, %p106
      %p108 = scmp.ne.s32.totalorder %s97, %s98
      %p109 = scmp.eq.s32.totalorder %s21, 0
      %p110 = por %p108, %p109
      %p111 = scmp.ne.s32.totalorder %s97, %s98
      %p112 = scmp.eq.s32.totalorder %s22, 1
      %p113 = por %p111, %p112
      %p115 = scmp.ne.s32.totalorder %s98, %s114
      %p116 = scmp.eq.s32.totalorder %s22, 0
      %p117 = por %p115, %p116
      %p118 = scmp.le.s32.totalorder 1, %s16
      %p119 = scmp.lt.s32.totalorder %s16, 3
      %p120 = pnand %p118, %p119
      %p121 = pneg %p120
      // Predicated region
      $region9: #{tpu_custom_call.1} parent=5 // pred_check
        _
      $region10: #{tpu_custom_call.1} parent=5 // pred_check_branch
        %123 = sbr.rel (%p120) target = $region12
      $region11: #{tpu_custom_call.1} parent=5 // pred_region
        %s124 = ssub.s32 %s16, 1
        // Predicated region
        $region13: #{tpu_custom_call.1} parent=11 // pred_check
          %p125 = pneg %p63
        $region14: #{tpu_custom_call.1} parent=11 // pred_check_branch
          %127 = sbr.rel (%p125) target = $region16
        $region15: #{tpu_custom_call.1} parent=11 // pred_region
          %s129 = ssub.s32 64, 64
          %130 = vsyncadd [#allocation6], %s129
          %s132 = sshll.u32 [#allocation5], 4
          %s133 = int_to_ptr.vmem [resolvable:$true] %s132
          %135 = dma.hbm_to_vmem [thread:$0]  %s1, 64, %s133, [#allocation6]
        $region16: #{tpu_custom_call.1} parent=11 // pred_fallthru
          _
        // Predicated region
        $region17: #{tpu_custom_call.1} parent=11 // pred_check
          %p136 = pneg %p84
        $region18: #{tpu_custom_call.1} parent=11 // pred_check_branch
          %138 = sbr.rel (%p136) target = $region20
        $region19: #{tpu_custom_call.1} parent=11 // pred_region
          _
        $region20: #{tpu_custom_call.1} parent=11 // pred_fallthru
          _
      $region12: #{tpu_custom_call.1} parent=5 // pred_fallthru
        _
      %p139 = scmp.lt.s32.totalorder %s16, 2
      // Predicated region
      $region21: #{tpu_custom_call.1} parent=5 // pred_check
        %p140 = pneg %p139
      $region22: #{tpu_custom_call.1} parent=5 // pred_check_branch
        %142 = sbr.rel (%p140) target = $region24
      $region23: #{tpu_custom_call.1} parent=5 // pred_region
        // Predicated region
        $region25: #{tpu_custom_call.1} parent=23 // pred_check
          %p143 = pneg %p36
        $region26: #{tpu_custom_call.1} parent=23 // pred_check_branch
          %145 = sbr.rel (%p143) target = $region28
        $region27: #{tpu_custom_call.1} parent=23 // pred_region
          %s146 = sand.u32 %s26, 1
          %s147 = scalar_lea.sflag [#allocation3], %s146
          %s148 = sand.u32 %s26, 1
          %s149 = smul.addr %s148, 8
          %s150 = scalar_lea.vmem [#allocation2], %s149
          %s152 = ssub.s32 128, 128
          %153 = vsyncadd %s147, %s152
          %s154 = smul.addr %s16, 2
          %s155 = smul.addr %s154, 64
          %s156 = scalar_lea.hbm %s0, %s155
          %s158 = sshll.u32 %s150, 4
          %s159 = int_to_ptr.vmem [resolvable:$true] %s158
          %161 = dma.hbm_to_vmem [thread:$0]  %s156, 128, %s159, %s147
        $region28: #{tpu_custom_call.1} parent=23 // pred_fallthru
          _
      $region24: #{tpu_custom_call.1} parent=5 // pred_fallthru
        _
      %p162 = scmp.le.s32.totalorder 1, %s16
      %p163 = scmp.lt.s32.totalorder %s16, 3
      %p164 = pnand %p162, %p163
      %p165 = pneg %p164
      // Predicated region
      $region29: #{tpu_custom_call.1} parent=5 // pred_check
        _
      $region30: #{tpu_custom_call.1} parent=5 // pred_check_branch
        %167 = sbr.rel (%p164) target = $region32
      $region31: #{tpu_custom_call.1} parent=5 // pred_region
        %s168 = ssub.s32 %s16, 1
        %s169 = sand.u32 %s29, 1
        %s170 = scalar_lea.sflag [#allocation3], %s169
        %s171 = sand.u32 %s29, 1
        %s172 = smul.addr %s171, 8
        %s173 = scalar_lea.vmem [#allocation2], %s172
        // Predicated region
        $region33: #{tpu_custom_call.1} parent=31 // pred_check
          %p174 = pneg %p42
        $region34: #{tpu_custom_call.1} parent=31 // pred_check_branch
          %176 = sbr.rel (%p174) target = $region36
        $region35: #{tpu_custom_call.1} parent=31 // pred_region
          %177 = dma.done %s170, 128
        $region36: #{tpu_custom_call.1} parent=31 // pred_fallthru
          _
        // Predicated region
        $region37: #{tpu_custom_call.1} parent=31 // pred_check
          %p178 = pneg %p63
        $region38: #{tpu_custom_call.1} parent=31 // pred_check_branch
          %180 = sbr.rel (%p178) target = $region40
        $region39: #{tpu_custom_call.1} parent=31 // pred_region
          %181 = dma.done [#allocation6], 64
        $region40: #{tpu_custom_call.1} parent=31 // pred_fallthru
          _
        %s182 = sand.u32 %s29, 1
        %s183 = scalar_lea.sflag [#allocation3], %s182
        %s184 = sand.u32 %s29, 1
        %s185 = smul.addr %s184, 8
        %s186 = scalar_lea.vmem [#allocation2], %s185
        %p187 = pneg %p42
        %p188 = pneg %p39
        %p189 = pneg %p63
        %p190 = pneg %p60
        %p191 = pneg %p84
        %p192 = pneg %p81
        %p193 = pneg %p110
        %p194 = pneg %p107
        %s195 = sand.u32 %s97, 1
        %s196 = scalar_lea.sflag [#allocation4], %s195
        %s197 = sand.u32 %s97, 1
        %s198 = smul.addr %s197, 8
        %s199 = scalar_lea.vmem [#allocation7], %s198
        %v200 = vld [vmem:[%s173] sm:$0xff]
        %v202 = vcombine.high %v200, %v200
        %vm204 = vcmask 1043456
        %v205 = vsel %vm204, %v200, 0.0
        %v206 = vsel %vm204, %v202, 0.0
        %v207 = vadd.f32 %v205, %v206
        %208 = vadd.xlane.f32.xlu0 %v207
        %v209 = vpop.xlane.xlu0 %208
        %v210 = vmul.f32 %v209, 0.00390625
        %v211 = vld [vmem:[#allocation5] sm:$0xf]
        %v213 = vlaneseq
        %v214 = vand.u32 %v213, 127
        %v215 = vlaneseq
        %v216 = vshrl.u32 %v215, 7
        %v217 = vsub.s32 %v214, %v216
        %v218 = vrot.slane %v210, %v217
        %vm219 = vcmask 31744
        %v220 = vsel %vm219, %v218, 0
        %v223 = vsel %vm204, %v211, 0
        %225 = vmatprep.subr.mxu0 0.0
        %226 = vmatpush1.msra.mxu0 %v223
        %227 = vmatprep.subr.mxu0 0.0
        %228 = vmatpush1.msra.mxu0 0.0
        %229 = vmatprep.subr.mxu0 0.0
        %230 = vmatpush1.msra.mxu0 0.0
        %231 = vmatprep.subr.mxu0 0.0
        %232 = vmatpush1.msra.mxu0 0.0
        %233 = vmatprep.subr.mxu0 0.0
        %234 = vmatpush1.msra.mxu0 0.0
        %235 = vmatprep.subr.mxu0 0.0
        %236 = vmatpush1.msra.mxu0 0.0
        %237 = vmatprep.subr.mxu0 0.0
        %238 = vmatpush1.msra.mxu0 0.0
        %239 = vmatprep.subr.mxu0 0.0
        %240 = vmatpush1.msra.mxu0 0.0
        %241 = vmatprep.subr.mxu0 0.0
        %242 = vmatpush1.msra.mxu0 0.0
        %243 = vmatprep.subr.mxu0 0.0
        %244 = vmatpush1.msra.mxu0 0.0
        %245 = vmatprep.subr.mxu0 0.0
        %246 = vmatpush1.msra.mxu0 0.0
        %247 = vmatprep.subr.mxu0 0.0
        %248 = vmatpush1.msra.mxu0 0.0
        %249 = vmatprep.subr.mxu0 0.0
        %250 = vmatpush1.msra.mxu0 0.0
        %251 = vmatprep.subr.mxu0 0.0
        %252 = vmatpush1.msra.mxu0 0.0
        %253 = vmatprep.subr.mxu0 0.0
        %254 = vmatpush1.msra.mxu0 0.0
        %255 = vmatprep.subr.mxu0 0.0
        %256 = vmatpush1.msra.mxu0 0.0
        %257 = vmatprep.subr.mxu0 0.0
        %258 = vmatpush1.msra.mxu0 0.0
        %259 = vmatprep.subr.mxu0 0.0
        %260 = vmatpush1.msra.mxu0 0.0
        %261 = vmatprep.subr.mxu0 0.0
        %262 = vmatpush1.msra.mxu0 0.0
        %263 = vmatprep.subr.mxu0 0.0
        %264 = vmatpush1.msra.mxu0 0.0
        %265 = vmatprep.subr.mxu0 0.0
        %266 = vmatpush1.msra.mxu0 0.0
        %267 = vmatprep.subr.mxu0 0.0
        %268 = vmatpush1.msra.mxu0 0.0
        %269 = vmatprep.subr.mxu0 0.0
        %270 = vmatpush1.msra.mxu0 0.0
        %271 = vmatprep.subr.mxu0 0.0
        %272 = vmatpush1.msra.mxu0 0.0
        %273 = vmatprep.subr.mxu0 0.0
        %274 = vmatpush1.msra.mxu0 0.0
        %275 = vmatprep.subr.mxu0 0.0
        %276 = vmatpush1.msra.mxu0 0.0
        %277 = vmatprep.subr.mxu0 0.0
        %278 = vmatpush1.msra.mxu0 0.0
        %279 = vmatprep.subr.mxu0 0.0
        %280 = vmatpush1.msra.mxu0 0.0
        %281 = vmatprep.subr.mxu0 0.0
        %282 = vmatpush1.msra.mxu0 0.0
        %283 = vmatprep.subr.mxu0 0.0
        %284 = vmatpush1.msra.mxu0 0.0
        %285 = vmatprep.subr.mxu0 0.0
        %286 = vmatpush1.msra.mxu0 0.0
        %287 = vmatprep.subr.mxu0 0.0
        %288 = vmatpush1.msra.mxu0 0.0
        %289 = vmatprep.mubr.f32.mxu0 0.0
        %290 = vmatmul.mubr.f32.gmra.mrb[0].mxu0 %v220
        %v291 = vpop.f32.mrb[0].mxu0
        %v292 = vadd.f32 0.0, %v291
        %v293 = vpop.f32.mrb[0].mxu0
        %294 = vdwg.mxu0
        %v295 = vmax.f32 %v292, 0.0
        %v296 = vld [vmem:[%s2] sm:$0xf]
        %v298 = vsel %vm219, %v295, 0
        %v301 = vsel %vm204, %v296, 0
        %303 = vmatprep.subr.mxu0 0.0
        %304 = vmatpush1.msra.mxu0 %v301
        %305 = vmatprep.subr.mxu0 0.0
        %306 = vmatpush1.msra.mxu0 0.0
        %307 = vmatprep.subr.mxu0 0.0
        %308 = vmatpush1.msra.mxu0 0.0
        %309 = vmatprep.subr.mxu0 0.0
        %310 = vmatpush1.msra.mxu0 0.0
        %311 = vmatprep.subr.mxu0 0.0
        %312 = vmatpush1.msra.mxu0 0.0
        %313 = vmatprep.subr.mxu0 0.0
        %314 = vmatpush1.msra.mxu0 0.0
        %315 = vmatprep.subr.mxu0 0.0
        %316 = vmatpush1.msra.mxu0 0.0
        %317 = vmatprep.subr.mxu0 0.0
        %318 = vmatpush1.msra.mxu0 0.0
        %319 = vmatprep.subr.mxu0 0.0
        %320 = vmatpush1.msra.mxu0 0.0
        %321 = vmatprep.subr.mxu0 0.0
        %322 = vmatpush1.msra.mxu0 0.0
        %323 = vmatprep.subr.mxu0 0.0
        %324 = vmatpush1.msra.mxu0 0.0
        %325 = vmatprep.subr.mxu0 0.0
        %326 = vmatpush1.msra.mxu0 0.0
        %327 = vmatprep.subr.mxu0 0.0
        %328 = vmatpush1.msra.mxu0 0.0
        %329 = vmatprep.subr.mxu0 0.0
        %330 = vmatpush1.msra.mxu0 0.0
        %331 = vmatprep.subr.mxu0 0.0
        %332 = vmatpush1.msra.mxu0 0.0
        %333 = vmatprep.subr.mxu0 0.0
        %334 = vmatpush1.msra.mxu0 0.0
        %335 = vmatprep.subr.mxu0 0.0
        %336 = vmatpush1.msra.mxu0 0.0
        %337 = vmatprep.subr.mxu0 0.0
        %338 = vmatpush1.msra.mxu0 0.0
        %339 = vmatprep.subr.mxu0 0.0
        %340 = vmatpush1.msra.mxu0 0.0
        %341 = vmatprep.subr.mxu0 0.0
        %342 = vmatpush1.msra.mxu0 0.0
        %343 = vmatprep.subr.mxu0 0.0
        %344 = vmatpush1.msra.mxu0 0.0
        %345 = vmatprep.subr.mxu0 0.0
        %346 = vmatpush1.msra.mxu0 0.0
        %347 = vmatprep.subr.mxu0 0.0
        %348 = vmatpush1.msra.mxu0 0.0
        %349 = vmatprep.subr.mxu0 0.0
        %350 = vmatpush1.msra.mxu0 0.0
        %351 = vmatprep.subr.mxu0 0.0
        %352 = vmatpush1.msra.mxu0 0.0
        %353 = vmatprep.subr.mxu0 0.0
        %354 = vmatpush1.msra.mxu0 0.0
        %355 = vmatprep.subr.mxu0 0.0
        %356 = vmatpush1.msra.mxu0 0.0
        %357 = vmatprep.subr.mxu0 0.0
        %358 = vmatpush1.msra.mxu0 0.0
        %359 = vmatprep.subr.mxu0 0.0
        %360 = vmatpush1.msra.mxu0 0.0
        %361 = vmatprep.subr.mxu0 0.0
        %362 = vmatpush1.msra.mxu0 0.0
        %363 = vmatprep.subr.mxu0 0.0
        %364 = vmatpush1.msra.mxu0 0.0
        %365 = vmatprep.subr.mxu0 0.0
        %366 = vmatpush1.msra.mxu0 0.0
        %367 = vmatprep.mubr.f32.mxu0 0.0
        %368 = vmatmul.mubr.f32.gmra.mrb[0].mxu0 %v298
        %v369 = vpop.f32.mrb[0].mxu0
        %v370 = vadd.f32 0.0, %v369
        %v371 = vpop.f32.mrb[0].mxu0
        %372 = vdwg.mxu0
        %v373 = vxor.u32 %v370, 2147483648
        %v374 = vmul.f32 %v373, 1.442695
        %v375 = vpow.pop %v374
        %v376 = vadd.f32 %v375, 1.0
        %v377 = vrcp.pop %v376
        %v378 = vmul.f32 1.0, %v377
        %v379 = vlaneseq
        %v380 = vshrl.u32 %v379, 7
        %v381 = vsub.s32 0, %v380
        %v382 = vrot.slane %v378, %v381
        %384 = vbcast.lane.b32.xlu0 %v382, 256
        %v385 = vpop.permute.xlu0 %384
        %v388 = vunpack.c.l.s4 839922192
        %v389 = vunpack.c.0.s8 %v388
        %v390 = vlaneseq
        %v391 = vshrl.u32 %v390, 7
        %v392 = vsub.s32 %v389, %v391
        %v393 = vrot.slane %v385, %v392
        %v395 = vmul.f32 %v200, %v393
        %396 = vst [vmem:[%s199] sm:$0xff] %v395
        %s397 = sand.u32 %s97, 1
        %s398 = scalar_lea.sflag [#allocation4], %s397
        %s399 = sand.u32 %s97, 1
        %s400 = smul.addr %s399, 8
        %s401 = scalar_lea.vmem [#allocation7], %s400
        // Predicated region
        $region41: #{tpu_custom_call.1} parent=31 // pred_check
          %p402 = pneg %p107
        $region42: #{tpu_custom_call.1} parent=31 // pred_check_branch
          %404 = sbr.rel (%p402) target = $region44
        $region43: #{tpu_custom_call.1} parent=31 // pred_region
          %s406 = ssub.s32 128, 128
          %407 = vsyncadd %s398, %s406
          %s408 = smul.addr %s21, 2
          %s409 = smul.addr %s408, 64
          %s410 = scalar_lea.hbm %s3, %s409
          %s412 = sshll.u32 %s401, 4
          %s413 = int_to_ptr.vmem [resolvable:$true] %s412
          %415 = dma.vmem_to_hbm [thread:$0]  %s413, 128, %s410, %s398
        $region44: #{tpu_custom_call.1} parent=31 // pred_fallthru
          _
      $region32: #{tpu_custom_call.1} parent=5 // pred_fallthru
        _
      %p416 = scmp.le.s32.totalorder 2, %s16
      // Predicated region
      $region45: #{tpu_custom_call.1} parent=5 // pred_check
        %p417 = pneg %p416
      $region46: #{tpu_custom_call.1} parent=5 // pred_check_branch
        %419 = sbr.rel (%p417) target = $region48
      $region47: #{tpu_custom_call.1} parent=5 // pred_region
        %s420 = ssub.s32 %s16, 2
        // Predicated region
        $region49: #{tpu_custom_call.1} parent=47 // pred_check
          %p421 = pneg %p113
        $region50: #{tpu_custom_call.1} parent=47 // pred_check_branch
          %423 = sbr.rel (%p421) target = $region52
        $region51: #{tpu_custom_call.1} parent=47 // pred_region
          %s424 = sand.u32 %s98, 1
          %s425 = scalar_lea.sflag [#allocation4], %s424
          %s426 = sand.u32 %s98, 1
          %s427 = smul.addr %s426, 8
          %s428 = scalar_lea.vmem [#allocation7], %s427
          %429 = dma.done %s425, 128
        $region52: #{tpu_custom_call.1} parent=47 // pred_fallthru
          _
      $region48: #{tpu_custom_call.1} parent=5 // pred_fallthru
        _
    $region6: #{tpu_custom_call.1} parent=1 // loop_footer
      %s20 = sadd.s32 1, %s16
    $region7: #{tpu_custom_call.1} parent=1 // loop_footer_branch
      %15 = sbr.rel target = $region3
    $region8: #{tpu_custom_call.1} parent=1 // loop_exit
      _
    %430 = vsyncpa [#allocation3], 1
    %s431 = scalar_lea.sflag [#allocation3], 1
    %432 = vsyncpa %s431, 1
    %433 = vsyncpa [#allocation6], 1
    %434 = vsyncpa [#allocation4], 1
    %s435 = scalar_lea.sflag [#allocation4], 1
    %436 = vsyncpa %s435, 1

</llo_original>
